<compile_context>
chip_gen: v7x
topology: tpu7x:2x2x1
jax: 0.10.0
libtpu: 0.0.40
codegen_flags: <defaults>
</compile_context>

<pallas_src>
import functools

import jax
import jax.numpy as jnp
from jax.experimental import pallas as pl
from jax.experimental.pallas import tpu as pltpu

_LANE = 128
_SUBLANE = 8


def _sine_activation_kernel(tau_ref, w_ref, b_ref, b0_ref, out_ref):
    f = out_ref.shape[-1]
    # One fused MXU matmul: (tn, D) @ (D, F) -> (tn, F), f32 accumulation.
    acc = jnp.dot(tau_ref[...], w_ref[...], preferred_element_type=jnp.float32)
    # Per-row bias assembled in VMEM (tiny): [b | b0] -> (tn, F).
    bias = jnp.concatenate(
        [b_ref[...].astype(jnp.float32), b0_ref[...].astype(jnp.float32)],
        axis=-1,
    )
    acc = acc + bias
    # sin on the first F-1 lanes only; the last lane stays linear.
    col = jax.lax.broadcasted_iota(jnp.int32, acc.shape, dimension=1)
    out_ref[...] = jnp.where(col < f - 1, jnp.sin(acc), acc).astype(out_ref.dtype)


def _round_up(x, m):
    return ((x + m - 1) // m) * m


def _choose_row_tile(n, d, f, itemsize, budget_bytes):
    # Streamed per-row VMEM bytes: tau (d), b (f-1), b0 (1), out (f); each
    # pads its last dim to 128 lanes and is double-buffered by the pipeline.
    per_row = sum(
        _round_up(width, _LANE) * itemsize * 2 for width in (d, f - 1, 1, f)
    )
    tn = max(_SUBLANE, (budget_bytes // per_row) // _SUBLANE * _SUBLANE)
    if tn >= n:
        # Whole batch fits in one tile.  Keep >= 2 grid steps when the batch
        # splits evenly, so the "parallel" axis can use both v7x TensorCores.
        if n >= 2 * _SUBLANE and n % (2 * _SUBLANE) == 0:
            return n // 2
        return n
    return tn


@functools.partial(jax.jit, static_argnames=("vmem_budget_bytes",))
def sine_activation(tau, w, b, w0, b0, *, vmem_budget_bytes=40 * 1024 * 1024):
    n, d = tau.shape
    fm1 = w.shape[1]
    f = fm1 + 1

    # Original-module broadcast semantics: bias rows line up with batch rows.
    if b.shape[0] != n or b0.shape[0] != n:
        raise ValueError(
            "SineActivation bias broadcast requires batch == in_features "
            f"(got batch={n}, bias rows={b.shape[0]})"
        )

    # Fuse periodic + linear weights: one tiny (D, F) MXU operand, VMEM-resident.
    w_full = jnp.concatenate([w, w0], axis=1)  # (D, F)

    vmem_limit_bytes = 48 * 1024 * 1024  # safe on v5e/v6e (128 MiB) and v7x (64 MiB)
    budget = min(vmem_budget_bytes, vmem_limit_bytes - 8 * 1024 * 1024)
    itemsize = max(jnp.dtype(tau.dtype).itemsize, 4)  # conservative (f32 padding)
    tn = _choose_row_tile(n, d, f, itemsize, budget)
    grid = (pl.cdiv(n, tn),)

    return pl.pallas_call(
        _sine_activation_kernel,
        out_shape=jax.ShapeDtypeStruct((n, f), tau.dtype),
        grid=grid,
        in_specs=[
            pl.BlockSpec((tn, d), lambda i: (i, 0)),    # tau: row-tiled
            pl.BlockSpec((d, f), lambda i: (0, 0)),     # fused W: resident
            pl.BlockSpec((tn, fm1), lambda i: (i, 0)),  # b: row-tiled like tau
            pl.BlockSpec((tn, 1), lambda i: (i, 0)),    # b0: row-tiled like tau
        ],
        out_specs=pl.BlockSpec((tn, f), lambda i: (i, 0)),
        compiler_params=pltpu.CompilerParams(
            dimension_semantics=("parallel",),
            vmem_limit_bytes=vmem_limit_bytes,
        ),
    )(tau, w_full, b, b0)


def sine_activation_ref(tau, w, b, w0, b0):
    v1 = jnp.sin(tau @ w + b)
    v2 = tau @ w0 + b0
    return jnp.concatenate([v1, v2], axis=-1)


if __name__ == "__main__":
    in_features = 8
    out_features = 16
    batch = in_features  # required by the module's bias broadcasting

    key = jax.random.PRNGKey(0)
    k_tau, k_w0, k_b0, k_w, k_b = jax.random.split(key, 5)

    tau = jax.random.normal(k_tau, (batch, in_features), dtype=jnp.float32)
    w0 = jax.random.normal(k_w0, (in_features, 1), dtype=jnp.float32)
    b0 = jax.random.normal(k_b0, (in_features, 1), dtype=jnp.float32)
    w = jax.random.normal(k_w, (in_features, out_features - 1), dtype=jnp.float32)
    b = jax.random.normal(k_b, (in_features, out_features - 1), dtype=jnp.float32)

    out = sine_activation(tau, w, b, w0, b0)
    out = jax.block_until_ready(out)

    ref = sine_activation_ref(tau, w, b, w0, b0)
    assert out.shape == (batch, out_features)
    assert jnp.allclose(out, ref, atol=1e-5, rtol=1e-5)

    print("KERNEL_OK")
</pallas_src>

<mosaic_0001>
module attributes {stable_mosaic.version = 11 : i64} {
  func.func @_sine_activation_kernel(%arg0: i32, %arg1: memref<8x8xf32, #tpu.memory_space<vmem>>, %arg2: memref<8x16xf32, #tpu.memory_space<vmem>>, %arg3: memref<8x15xf32, #tpu.memory_space<vmem>>, %arg4: memref<8x1xf32, #tpu.memory_space<vmem>>, %arg5: memref<8x16xf32, #tpu.memory_space<vmem>>) attributes {dimension_semantics = [#tpu.dimension_semantics<parallel>], iteration_bounds = array<i64: 1>, scalar_prefetch = 0 : i64, scratch_operands = 0 : i64, tpu.core_type = #tpu.core_type<tc>, window_params = [{transform_indices = @transform_0, window_bounds = array<i64: 8, 8>}, {pipeline_mode = #tpu.pipeline_mode<synchronous>, transform_indices = @transform_1, window_bounds = array<i64: 8, 16>}, {transform_indices = @transform_2, window_bounds = array<i64: 8, 15>}, {transform_indices = @transform_3, window_bounds = array<i64: 8, 1>}, {transform_indices = @transform_4, window_bounds = array<i64: 8, 16>}]} {
    %c0 = arith.constant 0 : index
    %c0_0 = arith.constant 0 : index
    %0 = vector.load %arg1[%c0, %c0_0] : memref<8x8xf32, #tpu.memory_space<vmem>>, vector<8x8xf32>
    %c0_1 = arith.constant 0 : index
    %c0_2 = arith.constant 0 : index
    %1 = vector.load %arg2[%c0_1, %c0_2] : memref<8x16xf32, #tpu.memory_space<vmem>>, vector<8x16xf32>
    %cst = arith.constant dense<0.000000e+00> : vector<8x16xf32>
    %2 = tpu.matmul %0, %1, %cst {dimension_numbers = #tpu.dot_dimension_numbers<[1], [0], [0], [1], [0, 0, 1, 1], [], []>} : vector<8x8xf32>, vector<8x16xf32>, vector<8x16xf32> -> vector<8x16xf32>
    %c0_3 = arith.constant 0 : index
    %c0_4 = arith.constant 0 : index
    %3 = vector.load %arg3[%c0_3, %c0_4] : memref<8x15xf32, #tpu.memory_space<vmem>>, vector<8x15xf32>
    %c0_5 = arith.constant 0 : index
    %c0_6 = arith.constant 0 : index
    %4 = vector.load %arg4[%c0_5, %c0_6] : memref<8x1xf32, #tpu.memory_space<vmem>>, vector<8x1xf32>
    %5 = tpu.concatenate %3, %4 in 1 : vector<8x15xf32>, vector<8x1xf32> -> vector<8x16xf32>
    %6 = arith.addf %2, %5 : vector<8x16xf32>
    %7 = tpu.iota {dimensions = array<i32: 1>} : vector<8x16xi32>
    %c15_i32 = arith.constant 15 : i32
    %8 = vector.broadcast %c15_i32 : i32 to vector<8x16xi32>
    %9 = arith.cmpi slt, %7, %8 : vector<8x16xi32>
    %10 = math.sin %6 : vector<8x16xf32>
    %11 = arith.select %9, %10, %6 : vector<8x16xi1>, vector<8x16xf32>
    %c0_7 = arith.constant 0 : index
    %c0_8 = arith.constant 0 : index
    %12 = vector.load %arg5[%c0_7, %c0_8] : memref<8x16xf32, #tpu.memory_space<vmem>>, vector<8x16xf32>
    tpu.vector_store %arg5[%c0_7, %c0_8], %11 {strides = array<i32>} : memref<8x16xf32, #tpu.memory_space<vmem>>, vector<8x16xf32>,
    return
  }
  func.func @transform_0(%arg0: i32) -> (i32, i32) {
    %c0_i32 = arith.constant 0 : i32
    %c0_i32_0 = arith.constant 0 : i32
    return %arg0, %c0_i32 : i32, i32
  }
  func.func @transform_1(%arg0: i32) -> (i32, i32) {
    %c0_i32 = arith.constant 0 : i32
    %c0_i32_0 = arith.constant 0 : i32
    %c0_i32_1 = arith.constant 0 : i32
    return %c0_i32, %c0_i32_0 : i32, i32
  }
  func.func @transform_2(%arg0: i32) -> (i32, i32) {
    %c0_i32 = arith.constant 0 : i32
    %c0_i32_0 = arith.constant 0 : i32
    return %arg0, %c0_i32 : i32, i32
  }
  func.func @transform_3(%arg0: i32) -> (i32, i32) {
    %c0_i32 = arith.constant 0 : i32
    %c0_i32_0 = arith.constant 0 : i32
    return %arg0, %c0_i32 : i32, i32
  }
  func.func @transform_4(%arg0: i32) -> (i32, i32) {
    %c0_i32 = arith.constant 0 : i32
    %c0_i32_0 = arith.constant 0 : i32
    return %arg0, %c0_i32 : i32, i32
  }
}

</mosaic_0001>

<llo_original>
// kernel: sine_activation.1
$region0: #{sine_activation.1}
  #allocation0 [shape = 'u32[]', space=smem, size = 0x4, offset = 0x4, fixed_abs, tag = 'smem constant byte address 0x4 - core index']
  #allocation1 [shape = 'u32[144,128]{1,0:T(1,128)}', space=vmem, size = 0x12000, scoped, tag = 'internal scratch']
  %s0 = inlined_call_operand.vmem [shape: f32[8,8], index: 0, kind: input, shape index: {}]
  %s1 = inlined_call_operand.vmem [shape: f32[8,16], index: 1, kind: input, shape index: {}]
  %s2 = inlined_call_operand.vmem [shape: f32[8,15], index: 2, kind: input, shape index: {}]
  %s3 = inlined_call_operand.vmem [shape: f32[8,1], index: 3, kind: input, shape index: {}]
  %s4 = inlined_call_operand.hbm [shape: f32[8,16], index: 4, kind: output, shape index: {}]
  %s5 = sld [smem:[#allocation0]]
  $region26: #{sine_activation.1} parent=0
    _
  %s7 = ssub.s32 1, %s5
  %s8 = scalar_select 0, %s7, %s5
  $region1: #{sine_activation.1} parent=0
    #allocation2 [shape = 'u8[4096]{0}', space=vmem, size = 0x1000, scoped, tag = 'output window, operand 0, single buffered']
    #allocation3 [shape = 's32[1]{0}', space=sflag, size = 0x4, scoped, tag = 'scoped memory for sine_activation.1']
    %9 = vsyncpa [#allocation3], 0
    // Predicated region
    $region2: #{sine_activation.1} parent=1 // pred_check
      _
    $region3: #{sine_activation.1} parent=1 // pred_check_branch
      %11 = sbr.rel (0) target = $region5
    $region4: #{sine_activation.1} parent=1 // pred_region
      _
    $region5: #{sine_activation.1} parent=1 // pred_fallthru
      _
    // Predicated region
    $region6: #{sine_activation.1} parent=1 // pred_check
      _
    $region7: #{sine_activation.1} parent=1 // pred_check_branch
      %13 = sbr.rel (0) target = $region9
    $region8: #{sine_activation.1} parent=1 // pred_region
      _
    $region9: #{sine_activation.1} parent=1 // pred_fallthru
      _
    // Predicated region
    $region10: #{sine_activation.1} parent=1 // pred_check
      _
    $region11: #{sine_activation.1} parent=1 // pred_check_branch
      %15 = sbr.rel (0) target = $region13
    $region12: #{sine_activation.1} parent=1 // pred_region
      _
    $region13: #{sine_activation.1} parent=1 // pred_fallthru
      _
    // Predicated region
    $region14: #{sine_activation.1} parent=1 // pred_check
      _
    $region15: #{sine_activation.1} parent=1 // pred_check_branch
      %17 = sbr.rel (0) target = $region17
    $region16: #{sine_activation.1} parent=1 // pred_region
      _
    $region17: #{sine_activation.1} parent=1 // pred_fallthru
      _
    %v18 = vld [vmem:[%s0] sm:$0xff]
    %v19 = vld [vmem:[%s1] sm:$0xff]
    %v20 = vld [vmem:[%s2] sm:$0xff]
    %v21 = vld [vmem:[%s3] sm:$0xff]
    %23 = vrot.lane.b32.xlu0 %v21, 15
    %v24 = vpop.permute.xlu0 %23
    %vm26 = vcmask 121856
    %v27 = vsel %vm26, %v20, %v24
    %vm28 = vcmask 64512
    %v30 = vsel %vm28, %v18, 0
    %32 = vmatprep.subr.mxu0 0.0
    %33 = vmatpush1.msra.mxu0 %v19
    %34 = vmatprep.subr.mxu0 0.0
    %35 = vmatpush1.msra.mxu0 0.0
    %36 = vmatprep.subr.mxu0 0.0
    %37 = vmatpush1.msra.mxu0 0.0
    %38 = vmatprep.subr.mxu0 0.0
    %39 = vmatpush1.msra.mxu0 0.0
    %40 = vmatprep.subr.mxu0 0.0
    %41 = vmatpush1.msra.mxu0 0.0
    %42 = vmatprep.subr.mxu0 0.0
    %43 = vmatpush1.msra.mxu0 0.0
    %44 = vmatprep.subr.mxu0 0.0
    %45 = vmatpush1.msra.mxu0 0.0
    %46 = vmatprep.subr.mxu0 0.0
    %47 = vmatpush1.msra.mxu0 0.0
    %48 = vmatprep.subr.mxu0 0.0
    %49 = vmatpush1.msra.mxu0 0.0
    %50 = vmatprep.subr.mxu0 0.0
    %51 = vmatpush1.msra.mxu0 0.0
    %52 = vmatprep.subr.mxu0 0.0
    %53 = vmatpush1.msra.mxu0 0.0
    %54 = vmatprep.subr.mxu0 0.0
    %55 = vmatpush1.msra.mxu0 0.0
    %56 = vmatprep.subr.mxu0 0.0
    %57 = vmatpush1.msra.mxu0 0.0
    %58 = vmatprep.subr.mxu0 0.0
    %59 = vmatpush1.msra.mxu0 0.0
    %60 = vmatprep.subr.mxu0 0.0
    %61 = vmatpush1.msra.mxu0 0.0
    %62 = vmatprep.subr.mxu0 0.0
    %63 = vmatpush1.msra.mxu0 0.0
    %64 = vmatprep.subr.mxu0 0.0
    %65 = vmatpush1.msra.mxu0 0.0
    %66 = vmatprep.subr.mxu0 0.0
    %67 = vmatpush1.msra.mxu0 0.0
    %68 = vmatprep.subr.mxu0 0.0
    %69 = vmatpush1.msra.mxu0 0.0
    %70 = vmatprep.subr.mxu0 0.0
    %71 = vmatpush1.msra.mxu0 0.0
    %72 = vmatprep.subr.mxu0 0.0
    %73 = vmatpush1.msra.mxu0 0.0
    %74 = vmatprep.subr.mxu0 0.0
    %75 = vmatpush1.msra.mxu0 0.0
    %76 = vmatprep.subr.mxu0 0.0
    %77 = vmatpush1.msra.mxu0 0.0
    %78 = vmatprep.subr.mxu0 0.0
    %79 = vmatpush1.msra.mxu0 0.0
    %80 = vmatprep.subr.mxu0 0.0
    %81 = vmatpush1.msra.mxu0 0.0
    %82 = vmatprep.subr.mxu0 0.0
    %83 = vmatpush1.msra.mxu0 0.0
    %84 = vmatprep.subr.mxu0 0.0
    %85 = vmatpush1.msra.mxu0 0.0
    %86 = vmatprep.subr.mxu0 0.0
    %87 = vmatpush1.msra.mxu0 0.0
    %88 = vmatprep.subr.mxu0 0.0
    %89 = vmatpush1.msra.mxu0 0.0
    %90 = vmatprep.subr.mxu0 0.0
    %91 = vmatpush1.msra.mxu0 0.0
    %92 = vmatprep.subr.mxu0 0.0
    %93 = vmatpush1.msra.mxu0 0.0
    %94 = vmatprep.subr.mxu0 0.0
    %95 = vmatpush1.msra.mxu0 0.0
    %96 = vmatprep.mubr.f32.mxu0 0.0
    %97 = vmatmul.mubr.f32.gmra.mrb[0].mxu0 %v30
    %v98 = vpop.f32.mrb[0].mxu0
    %v99 = vadd.f32 %v27, %v98
    %v100 = vpop.f32.mrb[0].mxu0
    %101 = vdwg.mxu0
    %v102 = vlaneseq
    %v103 = vand.u32 %v102, 127
    %vm104 = vcmp.lt.s32.totalorder %v103, 15
    %v105 = vand.u32 2147483647, %v99
    %vm106 = vcmp.le.f32.partialorder %v105, 0.7853982
    %vm107 = vcmp.lt.s32.totalorder %v99, 0
    %v108 = vand.u32 %v99, 2139095040
    %v109 = vshrl.u32 %v108, 23
    %v110 = vsub.s32 %v109, 127
    %v111 = vand.u32 2147483647, %v99
    %v112 = vand.u32 %v111, 8388607
    %v113 = vor.u32 %v112, 8388608
    %v114 = vsub.s32 0, %v113
    %v115 = vadd.s32 %v110, 1
    %vm116 = vcmp.gt.s32.totalorder %v115, 0
    %v117 = vsel %vm116, %v115, 0
    %v118 = vshrl.u32 %v117, 5
    %v119 = vand.u32 %v117, 31
    %v120 = vsub.s32 32, %v119
    %v121 = vshrl.u32 683565275, %v120
    %v122 = vshll.u32 683565275, %v119
    %v123 = vshrl.u32 2475754826, %v120
    %v124 = vor.u32 %v122, %v123
    %v125 = vshll.u32 2475754826, %v119
    %v126 = vshrl.u32 2131351028, %v120
    %v127 = vor.u32 %v125, %v126
    %v128 = vshll.u32 2131351028, %v119
    %v129 = vshrl.u32 2102212464, %v120
    %v130 = vor.u32 %v128, %v129
    %v131 = vshll.u32 2102212464, %v119
    %v132 = vshrl.u32 920167782, %v120
    %v133 = vor.u32 %v131, %v132
    %v134 = vshll.u32 920167782, %v119
    %v135 = vshrl.u32 1326507024, %v120
    %v136 = vor.u32 %v134, %v135
    %vm137 = vcmp.lt.s32.totalorder %v118, 1
    %vm138 = vcmp.lt.s32.totalorder %v118, 2
    %vm139 = vcmp.lt.s32.totalorder %v118, 3
    %vm140 = vcmp.lt.s32.totalorder %v118, 4
    %v141 = vsel %vm137, %v121, %v124
    %v142 = vsel %vm140, %v130, 2102212464
    %v143 = vsel %vm139, %v127, %v142
    %v144 = vsel %vm138, %v141, %v143
    %v145 = vsel %vm137, %v124, %v127
    %v146 = vsel %vm140, %v133, 920167782
    %v147 = vsel %vm139, %v130, %v146
    %v148 = vsel %vm138, %v145, %v147
    %v149 = vsel %vm137, %v127, %v130
    %v150 = vsel %vm140, %v136, 1326507024
    %v151 = vsel %vm139, %v133, %v150
    %v152 = vsel %vm138, %v149, %v151
    %v153 = vshll.u32 %v113, 8
    %v154 = vmul.u32.u64.compose %v153, %v152
    %v155 = vextract.low.u32 %v154
    %v156 = vextract.high.u32 %v154
    %v157 = vmul.u32.u64.compose %v153, %v148
    %v158 = vextract.low.u32 %v157
    %v159 = vextract.high.u32 %v157
    %v160 = vmul.u32 %v153, %v144
    %v161 = vadd.s32 %v156, %v158
    %vm162 = vc.u32 %v156, %v158
    %v163 = vadd.s32 %v159, 1
    %v164 = vsel %vm162, %v163, %v159
    %v165 = vadd.s32 %v160, %v164
    %v166 = vadd.s32 %v165, 536870912
    %v167 = vshrl.u32 %v166, 30
    %v168 = vshll.u32 %v167, 30
    %v169 = vsub.s32 %v165, %v168
    %vm170 = vcmp.lt.s32.totalorder %v169, 0
    %v171 = vsub.s32 0, %v169
    %v172 = vsel %vm170, %v171, %v169
    %v173 = vclz %v172
    %v174 = vsub.s32 %v173, 2
    %vm175 = vcmp.gt.s32.totalorder 0, %v174
    %v176 = vsel %vm175, 0, %v174
    %v177 = vsub.s32 32, %v176
    %v178 = vshll.u32 %v169, %v176
    %v179 = vshrl.u32 %v161, %v177
    %v180 = vor.u32 %v178, %v179
    %v181 = vsub.s32 4294967266, %v176
    %v182 = vadd.s32 %v181, 127
    %v183 = vshll.u32 %v182, 23
    %v184 = vor.u32 4788187, %v183
    %v185 = vand.u32 2147483647, %v184
    %v187 = vcvt.s32.f32 %v180
    %v188 = vmul.f32 %v187, %v185
    %v189 = vxor.u32 %v188, 2147483648
    %v190 = vsel %vm107, %v189, %v188
    %v191 = vsub.s32 4, %v167
    %v192 = vsel %vm107, %v191, %v167
    %v193 = vsel %vm106, %v99, %v190
    %v194 = vsel %vm106, 0, %v192
    %v195 = vcosq.f32.pop %v193
    %v196 = vsinq.f32.pop %v193
    %vm197 = vweird.f32 %v99
    %v198 = vadd.s32 %v194, 3
    %v199 = vand.u32 %v198, 3
    %vm200 = vcmp.lt.s32.totalorder %v199, 2
    %vm201 = vcmp.eq.s32.totalorder %v199, 0
    %v202 = vxor.u32 %v196, 2147483648
    %v203 = vsel %vm201, %v195, %v202
    %vm204 = vcmp.eq.s32.totalorder %v199, 2
    %v205 = vxor.u32 %v195, 2147483648
    %v206 = vsel %vm204, %v205, %v196
    %v207 = vsel %vm200, %v203, %v206
    %v208 = vsel %vm197, nan, %v207
    %v209 = vsel %vm104, %v208, %v99
    %vm210 = vcmask 130048
    %211 = vst.msk [vmem:[#allocation2] sm:$0xff] %vm210, %v209
    // Predicated region
    $region18: #{sine_activation.1} parent=1 // pred_check
      _
    $region19: #{sine_activation.1} parent=1 // pred_check_branch
      %213 = sbr.rel (0) target = $region21
    $region20: #{sine_activation.1} parent=1 // pred_region
      %s215 = ssub.s32 128, 128
      %216 = vsyncadd [#allocation3], %s215
      %s218 = sshll.u32 [#allocation2], 4
      %s219 = int_to_ptr.vmem [resolvable:$true] %s218
      %221 = dma.vmem_to_hbm [thread:$0]  %s219, 128, %s4, [#allocation3]
    $region21: #{sine_activation.1} parent=1 // pred_fallthru
      _
    // Predicated region
    $region22: #{sine_activation.1} parent=1 // pred_check
      _
    $region23: #{sine_activation.1} parent=1 // pred_check_branch
      %223 = sbr.rel (0) target = $region25
    $region24: #{sine_activation.1} parent=1 // pred_region
      %224 = dma.done [#allocation3], 128
    $region25: #{sine_activation.1} parent=1 // pred_fallthru
      _
    %225 = vsyncpa [#allocation3], 1

</llo_original>
